<compile_context>
chip_gen: v5e
topology: v5e:2x2
jax: 0.10.0
libtpu: 0.0.40
codegen_flags: <defaults>
</compile_context>

<pallas_src>
import functools

import jax
import jax.numpy as jnp
from jax.experimental import pallas as pl
from jax.experimental.pallas import tpu as pltpu


def _lstm_kernel(x_ref, w_ih_t_ref, w_hh_t_ref, bias_ref, fc_w_ref, fc_b_ref,
                 h0_ref, c0_ref,
                 out_ref, h_out_ref, c_out_ref,
                 *scratch,
                 seq_len, batch, hidden_size, unroll, xw_in_vregs):
    T, B, H = seq_len, batch, hidden_size

    w_ih_t = w_ih_t_ref[...]                              # (D, 4H), maybe bf16
    w_hh_t = w_hh_t_ref[...]                              # (H, 4H), maybe bf16
    bias = bias_ref[...]                                  # (1, 4H) f32

    # Lane mask selecting the "g" (cell candidate) lanes [2H, 3H) of the 4H axis.
    lane = jax.lax.broadcasted_iota(jnp.int32, (B, 4 * H), 1)
    g_mask = jnp.logical_and(lane >= 2 * H, lane < 3 * H)
    half = jnp.float32(0.5)

    def cell(xw_t, h, c):
        # gates = xw[t] + h @ W_hh^T   (MXU, f32 accumulate; operands maybe bf16)
        gates = xw_t + jnp.dot(h.astype(w_hh_t.dtype), w_hh_t,
                               preferred_element_type=jnp.float32)
        # Single fused EUP pass: sigmoid(x) = 0.5 * (1 + tanh(x / 2)).
        pre = jnp.where(g_mask, gates, half * gates)
        th = jnp.tanh(pre)
        act = jnp.where(g_mask, th, half * th + half)
        i_g = act[:, 0 * H:1 * H]
        f_g = act[:, 1 * H:2 * H]
        g_g = act[:, 2 * H:3 * H]
        o_g = act[:, 3 * H:4 * H]
        c_new = f_g * c + i_g * g_g
        h_new = o_g * jnp.tanh(c_new)
        return h_new, c_new

    h = h0_ref[...]                                       # (B, H) f32
    c = c0_ref[...]

    if xw_in_vregs:
        # Hoisted input projection held as a value (a handful of vregs);
        # fully-unrolled recurrence with static (free) row extracts.
        xw = (jnp.dot(x_ref[...], w_ih_t, preferred_element_type=jnp.float32)
              + bias)                                     # (T*B, 4H) f32
        for t in range(T):
            h, c = cell(xw[t * B:(t + 1) * B, :], h, c)
    else:
        # Hoisted input projection into a VMEM scratch; capped-unroll loop with
        # 8-aligned dynamic row loads (B is a multiple of 8).
        xw_ref = scratch[0]
        xw_ref[...] = (jnp.dot(x_ref[...], w_ih_t,
                               preferred_element_type=jnp.float32) + bias)

        def body(t, carry):
            hh, cc = carry
            start = pl.multiple_of(t * B, B)
            return cell(xw_ref[pl.ds(start, B), :], hh, cc)

        h, c = jax.lax.fori_loop(0, T, body, (h, c), unroll=unroll)

    # fc: Linear(H, 1) as a lane reduction (avoids a 1-column MXU matmul).
    out_ref[...] = (jnp.sum(h * fc_w_ref[...], axis=-1, keepdims=True)
                    + fc_b_ref[...])
    h_out_ref[...] = h
    c_out_ref[...] = c


@functools.partial(jax.jit, static_argnames=("use_bf16",))
def _forward_jit(x, params, h0, c0, *, use_bf16):
    B, T, D = x.shape
    H = params["w_hh"].shape[1]
    Bp = ((B + 7) // 8) * 8           # pad batch to one f32 sublane tile (>= 8)
    pad = Bp - B
    mm_dtype = jnp.bfloat16 if use_bf16 else jnp.float32

    if pad:
        x = jnp.pad(x, ((0, pad), (0, 0), (0, 0)))
        h0 = jnp.pad(h0, ((0, pad), (0, 0)))
        c0 = jnp.pad(c0, ((0, pad), (0, 0)))

    # Time-major, flattened over (T, Bp) so the input projection is ONE matmul.
    x2d = jnp.transpose(x, (1, 0, 2)).reshape(T * Bp, D).astype(mm_dtype)
    w_ih_t = params["w_ih"].T.astype(mm_dtype)                       # (D, 4H)
    w_hh_t = params["w_hh"].T.astype(mm_dtype)                       # (H, 4H)
    bias = (params["b_ih"] + params["b_hh"]).reshape(1, 4 * H).astype(jnp.float32)
    fc_w = params["fc_w"].reshape(1, H).astype(jnp.float32)          # (1, H)
    fc_b = params["fc_b"].reshape(1, 1).astype(jnp.float32)          # (1, 1)

    # Keep the projected inputs in vregs (no scratch, full unroll) when small.
    xw_bytes = T * Bp * 4 * H * 4
    xw_in_vregs = (T <= 32) and (xw_bytes <= 64 * 1024)
    unroll = True if xw_in_vregs else min(T, 8)
    scratch_shapes = ([] if xw_in_vregs
                      else [pltpu.VMEM((T * Bp, 4 * H), jnp.float32)])

    kernel = functools.partial(
        _lstm_kernel, seq_len=T, batch=Bp, hidden_size=H,
        unroll=unroll, xw_in_vregs=xw_in_vregs)

    vmem = lambda: pl.BlockSpec(memory_space=pltpu.MemorySpace.VMEM)
    # NOTE: for very long sequences, this whole-sequence-in-VMEM design should be
    # replaced by a time-chunked grid / emit_pipeline streaming (chunk, 4H) slabs.
    out, h_n, c_n = pl.pallas_call(
        kernel,
        out_shape=(
            jax.ShapeDtypeStruct((Bp, 1), jnp.float32),
            jax.ShapeDtypeStruct((Bp, H), jnp.float32),
            jax.ShapeDtypeStruct((Bp, H), jnp.float32),
        ),
        in_specs=[vmem() for _ in range(8)],
        out_specs=(vmem(), vmem(), vmem()),
        scratch_shapes=scratch_shapes,
        compiler_params=pltpu.CompilerParams(
            vmem_limit_bytes=32 * 1024 * 1024),
    )(x2d, w_ih_t, w_hh_t, bias, fc_w, fc_b, h0, c0)

    return out[:B], h_n[:B], c_n[:B]


def stateful_lstm_forward(x, params, hidden=None, *, matmul_dtype=jnp.bfloat16):
    """Forward pass equivalent to StatefulLSTM.forward.

    x: (B, T, D) float32 (batch_first, like PyTorch).
    hidden: optional (h0, c0), each reshapable to (B, H); None -> zeros
            (PyTorch default in the module).
    matmul_dtype: MXU operand dtype. bfloat16 (default) for speed (f32 accumulate);
                  float32 to match the f32 PyTorch numerics tightly.
    Returns (out, (h_n, c_n)) with out: (B, 1), h_n/c_n: (num_layers=1, B, H).
    """
    x = jnp.asarray(x, jnp.float32)
    B, T, D = x.shape
    if T < 1:
        raise ValueError("seq_len must be >= 1")
    H = params["w_hh"].shape[1]

    if hidden is None:
        h0 = jnp.zeros((B, H), jnp.float32)
        c0 = jnp.zeros((B, H), jnp.float32)
    else:
        h0 = jnp.asarray(hidden[0], jnp.float32).reshape(B, H)
        c0 = jnp.asarray(hidden[1], jnp.float32).reshape(B, H)

    use_bf16 = jnp.dtype(matmul_dtype) == jnp.dtype(jnp.bfloat16)
    out, h_n, c_n = _forward_jit(x, params, h0, c0, use_bf16=use_bf16)
    return out, (h_n[jnp.newaxis], c_n[jnp.newaxis])


def _reference_forward(x, params, hidden=None):
    """Pure-JAX reference matching PyTorch nn.LSTM (1 layer) + Linear."""
    B, T, D = x.shape
    H = params["w_hh"].shape[1]
    w_ih_t = params["w_ih"].T
    w_hh_t = params["w_hh"].T
    bias = params["b_ih"] + params["b_hh"]
    if hidden is None:
        h = jnp.zeros((B, H), jnp.float32)
        c = jnp.zeros((B, H), jnp.float32)
    else:
        h = jnp.asarray(hidden[0], jnp.float32).reshape(B, H)
        c = jnp.asarray(hidden[1], jnp.float32).reshape(B, H)
    for t in range(T):
        gates = x[:, t, :] @ w_ih_t + h @ w_hh_t + bias
        i_g = jax.nn.sigmoid(gates[:, 0 * H:1 * H])
        f_g = jax.nn.sigmoid(gates[:, 1 * H:2 * H])
        g_g = jnp.tanh(gates[:, 2 * H:3 * H])
        o_g = jax.nn.sigmoid(gates[:, 3 * H:4 * H])
        c = f_g * c + i_g * g_g
        h = o_g * jnp.tanh(c)
    out = h @ params["fc_w"].T + params["fc_b"]
    return out, (h[None], c[None])


def init_params(key, input_size, hidden_size):
    """Deterministic init mimicking PyTorch's uniform(-1/sqrt(H), 1/sqrt(H))."""
    k = 1.0 / jnp.sqrt(jnp.float32(hidden_size))
    keys = jax.random.split(key, 6)
    u = lambda kk, shape: jax.random.uniform(kk, shape, jnp.float32, -k, k)
    return {
        "w_ih": u(keys[0], (4 * hidden_size, input_size)),
        "w_hh": u(keys[1], (4 * hidden_size, hidden_size)),
        "b_ih": u(keys[2], (4 * hidden_size,)),
        "b_hh": u(keys[3], (4 * hidden_size,)),
        "fc_w": u(keys[4], (1, hidden_size)),
        "fc_b": u(keys[5], (1,)),
    }


if __name__ == "__main__":
    # Small shapes consistent with the module; batch=8 fills one f32 sublane tile
    # (the review's biggest lever), seq=8, input_size=16, hidden_size=32 (4H = 128 lanes).
    B, T, D, H = 8, 8, 16, 32
    key = jax.random.PRNGKey(0)
    pkey, xkey, x2key, x3key = jax.random.split(key, 4)
    params = init_params(pkey, D, H)
    x = jax.random.normal(xkey, (B, T, D), jnp.float32)

    out_ref, (h_ref, c_ref) = _reference_forward(x, params)

    # 1) f32 MXU-operand path: tight match to the f32 reference.
    out32, (h32, c32) = stateful_lstm_forward(x, params, matmul_dtype=jnp.float32)
    jax.block_until_ready((out32, h32, c32))
    assert out32.shape == (B, 1) and h32.shape == (1, B, H) and c32.shape == (1, B, H)
    assert jnp.allclose(out32, out_ref, atol=1e-4, rtol=1e-4)
    assert jnp.allclose(h32, h_ref, atol=1e-4, rtol=1e-4)
    assert jnp.allclose(c32, c_ref, atol=1e-4, rtol=1e-4)

    # 2) bf16 MXU-operand path (default, fast): looser tolerance from bf16 rounding.
    out16, (h16, c16) = stateful_lstm_forward(x, params)
    jax.block_until_ready((out16, h16, c16))
    assert jnp.allclose(out16, out_ref, atol=5e-2, rtol=5e-2)
    assert jnp.allclose(h16, h_ref, atol=5e-2, rtol=5e-2)
    assert jnp.allclose(c16, c_ref, atol=5e-2, rtol=5e-2)

    # 3) "Stateful" carry (the module's `hidden` argument) with an odd batch,
    #    exercising the pad-to-sublane-tile path.
    B2 = 3
    x2 = jax.random.normal(x2key, (B2, T, D), jnp.float32)
    h_in, c_in = h_ref[:, :B2], c_ref[:, :B2]
    out2, (h2, c2) = stateful_lstm_forward(x2, params, hidden=(h_in, c_in),
                                           matmul_dtype=jnp.float32)
    jax.block_until_ready((out2, h2, c2))
    out2_ref, (h2_ref, c2_ref) = _reference_forward(x2, params, hidden=(h_in, c_in))
    assert jnp.allclose(out2, out2_ref, atol=1e-4, rtol=1e-4)
    assert jnp.allclose(h2, h2_ref, atol=1e-4, rtol=1e-4)
    assert jnp.allclose(c2, c2_ref, atol=1e-4, rtol=1e-4)

    # 4) Longer sequence: exercises the VMEM-scratch + capped-unroll (8) path.
    T3 = 40
    x3 = jax.random.normal(x3key, (B, T3, D), jnp.float32)
    out3, (h3, c3) = stateful_lstm_forward(x3, params, matmul_dtype=jnp.float32)
    jax.block_until_ready((out3, h3, c3))
    out3_ref, (h3_ref, c3_ref) = _reference_forward(x3, params)
    assert jnp.allclose(out3, out3_ref, atol=1e-4, rtol=1e-4)
    assert jnp.allclose(h3, h3_ref, atol=1e-4, rtol=1e-4)
    assert jnp.allclose(c3, c3_ref, atol=1e-4, rtol=1e-4)

    print("KERNEL_OK")
</pallas_src>

<mosaic_0001>
module attributes {stable_mosaic.version = 11 : i64} {
  func.func @_lstm_kernel(%arg0: memref<64x16xf32, #tpu.memory_space<vmem>>, %arg1: memref<16x128xf32, #tpu.memory_space<vmem>>, %arg2: memref<32x128xf32, #tpu.memory_space<vmem>>, %arg3: memref<1x128xf32, #tpu.memory_space<vmem>>, %arg4: memref<1x32xf32, #tpu.memory_space<vmem>>, %arg5: memref<1x1xf32, #tpu.memory_space<vmem>>, %arg6: memref<8x32xf32, #tpu.memory_space<vmem>>, %arg7: memref<8x32xf32, #tpu.memory_space<vmem>>, %arg8: memref<8x1xf32, #tpu.memory_space<vmem>>, %arg9: memref<8x32xf32, #tpu.memory_space<vmem>>, %arg10: memref<8x32xf32, #tpu.memory_space<vmem>>) attributes {dimension_semantics = [], scalar_prefetch = 0 : i64, scratch_operands = 0 : i64, tpu.core_type = #tpu.core_type<tc>} {
    %c0 = arith.constant 0 : index
    %c0_0 = arith.constant 0 : index
    %0 = vector.load %arg1[%c0, %c0_0] : memref<16x128xf32, #tpu.memory_space<vmem>>, vector<16x128xf32>
    %c0_1 = arith.constant 0 : index
    %c0_2 = arith.constant 0 : index
    %1 = vector.load %arg2[%c0_1, %c0_2] : memref<32x128xf32, #tpu.memory_space<vmem>>, vector<32x128xf32>
    %c0_3 = arith.constant 0 : index
    %c0_4 = arith.constant 0 : index
    %2 = vector.load %arg3[%c0_3, %c0_4] : memref<1x128xf32, #tpu.memory_space<vmem>>, vector<1x128xf32>
    %3 = tpu.iota {dimensions = array<i32: 1>} : vector<8x128xi32>
    %c64_i32 = arith.constant 64 : i32
    %4 = vector.broadcast %c64_i32 : i32 to vector<8x128xi32>
    %5 = arith.cmpi sge, %3, %4 : vector<8x128xi32>
    %c96_i32 = arith.constant 96 : i32
    %6 = vector.broadcast %c96_i32 : i32 to vector<8x128xi32>
    %7 = arith.cmpi slt, %3, %6 : vector<8x128xi32>
    %8 = arith.andi %5, %7 : vector<8x128xi1>
    %c0_5 = arith.constant 0 : index
    %c0_6 = arith.constant 0 : index
    %9 = vector.load %arg6[%c0_5, %c0_6] : memref<8x32xf32, #tpu.memory_space<vmem>>, vector<8x32xf32>
    %c0_7 = arith.constant 0 : index
    %c0_8 = arith.constant 0 : index
    %10 = vector.load %arg7[%c0_7, %c0_8] : memref<8x32xf32, #tpu.memory_space<vmem>>, vector<8x32xf32>
    %c0_9 = arith.constant 0 : index
    %c0_10 = arith.constant 0 : index
    %11 = vector.load %arg0[%c0_9, %c0_10] : memref<64x16xf32, #tpu.memory_space<vmem>>, vector<64x16xf32>
    %cst = arith.constant dense<0.000000e+00> : vector<64x128xf32>
    %12 = tpu.matmul %11, %0, %cst {dimension_numbers = #tpu.dot_dimension_numbers<[1], [0], [0], [1], [0, 0, 1, 1], [], []>} : vector<64x16xf32>, vector<16x128xf32>, vector<64x128xf32> -> vector<64x128xf32>
    %13 = vector.broadcast %2 : vector<1x128xf32> to vector<64x128xf32>
    %14 = arith.addf %12, %13 : vector<64x128xf32>
    %15 = vector.extract_strided_slice %14 {offsets = [0, 0], sizes = [8, 128], strides = [1, 1]} : vector<64x128xf32> to vector<8x128xf32>
    %cst_11 = arith.constant dense<0.000000e+00> : vector<8x128xf32>
    %16 = tpu.matmul %9, %1, %cst_11 {dimension_numbers = #tpu.dot_dimension_numbers<[1], [0], [0], [1], [0, 0, 1, 1], [], []>} : vector<8x32xf32>, vector<32x128xf32>, vector<8x128xf32> -> vector<8x128xf32>
    %17 = arith.addf %15, %16 : vector<8x128xf32>
    %cst_12 = arith.constant 5.000000e-01 : f32
    %18 = vector.broadcast %cst_12 : f32 to vector<8x128xf32>
    %19 = arith.mulf %18, %17 : vector<8x128xf32>
    %20 = arith.select %8, %17, %19 : vector<8x128xi1>, vector<8x128xf32>
    %21 = math.tanh %20 : vector<8x128xf32>
    %cst_13 = arith.constant 5.000000e-01 : f32
    %22 = vector.broadcast %cst_13 : f32 to vector<8x128xf32>
    %23 = arith.mulf %22, %21 : vector<8x128xf32>
    %cst_14 = arith.constant 5.000000e-01 : f32
    %24 = vector.broadcast %cst_14 : f32 to vector<8x128xf32>
    %25 = arith.addf %23, %24 : vector<8x128xf32>
    %26 = arith.select %8, %21, %25 : vector<8x128xi1>, vector<8x128xf32>
    %27 = vector.extract_strided_slice %26 {offsets = [0, 0], sizes = [8, 32], strides = [1, 1]} : vector<8x128xf32> to vector<8x32xf32>
    %28 = vector.extract_strided_slice %26 {offsets = [0, 32], sizes = [8, 32], strides = [1, 1]} : vector<8x128xf32> to vector<8x32xf32>
    %29 = vector.extract_strided_slice %26 {offsets = [0, 64], sizes = [8, 32], strides = [1, 1]} : vector<8x128xf32> to vector<8x32xf32>
    %30 = vector.extract_strided_slice %26 {offsets = [0, 96], sizes = [8, 32], strides = [1, 1]} : vector<8x128xf32> to vector<8x32xf32>
    %31 = arith.mulf %28, %10 : vector<8x32xf32>
    %32 = arith.mulf %27, %29 : vector<8x32xf32>
    %33 = arith.addf %31, %32 : vector<8x32xf32>
    %34 = math.tanh %33 : vector<8x32xf32>
    %35 = arith.mulf %30, %34 : vector<8x32xf32>
    %36 = vector.extract_strided_slice %14 {offsets = [8, 0], sizes = [8, 128], strides = [1, 1]} : vector<64x128xf32> to vector<8x128xf32>
    %cst_15 = arith.constant dense<0.000000e+00> : vector<8x128xf32>
    %37 = tpu.matmul %35, %1, %cst_15 {dimension_numbers = #tpu.dot_dimension_numbers<[1], [0], [0], [1], [0, 0, 1, 1], [], []>} : vector<8x32xf32>, vector<32x128xf32>, vector<8x128xf32> -> vector<8x128xf32>
    %38 = arith.addf %36, %37 : vector<8x128xf32>
    %cst_16 = arith.constant 5.000000e-01 : f32
    %39 = vector.broadcast %cst_16 : f32 to vector<8x128xf32>
    %40 = arith.mulf %39, %38 : vector<8x128xf32>
    %41 = arith.select %8, %38, %40 : vector<8x128xi1>, vector<8x128xf32>
    %42 = math.tanh %41 : vector<8x128xf32>
    %cst_17 = arith.constant 5.000000e-01 : f32
    %43 = vector.broadcast %cst_17 : f32 to vector<8x128xf32>
    %44 = arith.mulf %43, %42 : vector<8x128xf32>
    %cst_18 = arith.constant 5.000000e-01 : f32
    %45 = vector.broadcast %cst_18 : f32 to vector<8x128xf32>
    %46 = arith.addf %44, %45 : vector<8x128xf32>
    %47 = arith.select %8, %42, %46 : vector<8x128xi1>, vector<8x128xf32>
    %48 = vector.extract_strided_slice %47 {offsets = [0, 0], sizes = [8, 32], strides = [1, 1]} : vector<8x128xf32> to vector<8x32xf32>
    %49 = vector.extract_strided_slice %47 {offsets = [0, 32], sizes = [8, 32], strides = [1, 1]} : vector<8x128xf32> to vector<8x32xf32>
    %50 = vector.extract_strided_slice %47 {offsets = [0, 64], sizes = [8, 32], strides = [1, 1]} : vector<8x128xf32> to vector<8x32xf32>
    %51 = vector.extract_strided_slice %47 {offsets = [0, 96], sizes = [8, 32], strides = [1, 1]} : vector<8x128xf32> to vector<8x32xf32>
    %52 = arith.mulf %49, %33 : vector<8x32xf32>
    %53 = arith.mulf %48, %50 : vector<8x32xf32>
    %54 = arith.addf %52, %53 : vector<8x32xf32>
    %55 = math.tanh %54 : vector<8x32xf32>
    %56 = arith.mulf %51, %55 : vector<8x32xf32>
    %57 = vector.extract_strided_slice %14 {offsets = [16, 0], sizes = [8, 128], strides = [1, 1]} : vector<64x128xf32> to vector<8x128xf32>
    %cst_19 = arith.constant dense<0.000000e+00> : vector<8x128xf32>
    %58 = tpu.matmul %56, %1, %cst_19 {dimension_numbers = #tpu.dot_dimension_numbers<[1], [0], [0], [1], [0, 0, 1, 1], [], []>} : vector<8x32xf32>, vector<32x128xf32>, vector<8x128xf32> -> vector<8x128xf32>
    %59 = arith.addf %57, %58 : vector<8x128xf32>
    %cst_20 = arith.constant 5.000000e-01 : f32
    %60 = vector.broadcast %cst_20 : f32 to vector<8x128xf32>
    %61 = arith.mulf %60, %59 : vector<8x128xf32>
    %62 = arith.select %8, %59, %61 : vector<8x128xi1>, vector<8x128xf32>
    %63 = math.tanh %62 : vector<8x128xf32>
    %cst_21 = arith.constant 5.000000e-01 : f32
    %64 = vector.broadcast %cst_21 : f32 to vector<8x128xf32>
    %65 = arith.mulf %64, %63 : vector<8x128xf32>
    %cst_22 = arith.constant 5.000000e-01 : f32
    %66 = vector.broadcast %cst_22 : f32 to vector<8x128xf32>
    %67 = arith.addf %65, %66 : vector<8x128xf32>
    %68 = arith.select %8, %63, %67 : vector<8x128xi1>, vector<8x128xf32>
    %69 = vector.extract_strided_slice %68 {offsets = [0, 0], sizes = [8, 32], strides = [1, 1]} : vector<8x128xf32> to vector<8x32xf32>
    %70 = vector.extract_strided_slice %68 {offsets = [0, 32], sizes = [8, 32], strides = [1, 1]} : vector<8x128xf32> to vector<8x32xf32>
    %71 = vector.extract_strided_slice %68 {offsets = [0, 64], sizes = [8, 32], strides = [1, 1]} : vector<8x128xf32> to vector<8x32xf32>
    %72 = vector.extract_strided_slice %68 {offsets = [0, 96], sizes = [8, 32], strides = [1, 1]} : vector<8x128xf32> to vector<8x32xf32>
    %73 = arith.mulf %70, %54 : vector<8x32xf32>
    %74 = arith.mulf %69, %71 : vector<8x32xf32>
    %75 = arith.addf %73, %74 : vector<8x32xf32>
    %76 = math.tanh %75 : vector<8x32xf32>
    %77 = arith.mulf %72, %76 : vector<8x32xf32>
    %78 = vector.extract_strided_slice %14 {offsets = [24, 0], sizes = [8, 128], strides = [1, 1]} : vector<64x128xf32> to vector<8x128xf32>
    %cst_23 = arith.constant dense<0.000000e+00> : vector<8x128xf32>
    %79 = tpu.matmul %77, %1, %cst_23 {dimension_numbers = #tpu.dot_dimension_numbers<[1], [0], [0], [1], [0, 0, 1, 1], [], []>} : vector<8x32xf32>, vector<32x128xf32>, vector<8x128xf32> -> vector<8x128xf32>
    %80 = arith.addf %78, %79 : vector<8x128xf32>
    %cst_24 = arith.constant 5.000000e-01 : f32
    %81 = vector.broadcast %cst_24 : f32 to vector<8x128xf32>
    %82 = arith.mulf %81, %80 : vector<8x128xf32>
    %83 = arith.select %8, %80, %82 : vector<8x128xi1>, vector<8x128xf32>
    %84 = math.tanh %83 : vector<8x128xf32>
    %cst_25 = arith.constant 5.000000e-01 : f32
    %85 = vector.broadcast %cst_25 : f32 to vector<8x128xf32>
    %86 = arith.mulf %85, %84 : vector<8x128xf32>
    %cst_26 = arith.constant 5.000000e-01 : f32
    %87 = vector.broadcast %cst_26 : f32 to vector<8x128xf32>
    %88 = arith.addf %86, %87 : vector<8x128xf32>
    %89 = arith.select %8, %84, %88 : vector<8x128xi1>, vector<8x128xf32>
    %90 = vector.extract_strided_slice %89 {offsets = [0, 0], sizes = [8, 32], strides = [1, 1]} : vector<8x128xf32> to vector<8x32xf32>
    %91 = vector.extract_strided_slice %89 {offsets = [0, 32], sizes = [8, 32], strides = [1, 1]} : vector<8x128xf32> to vector<8x32xf32>
    %92 = vector.extract_strided_slice %89 {offsets = [0, 64], sizes = [8, 32], strides = [1, 1]} : vector<8x128xf32> to vector<8x32xf32>
    %93 = vector.extract_strided_slice %89 {offsets = [0, 96], sizes = [8, 32], strides = [1, 1]} : vector<8x128xf32> to vector<8x32xf32>
    %94 = arith.mulf %91, %75 : vector<8x32xf32>
    %95 = arith.mulf %90, %92 : vector<8x32xf32>
    %96 = arith.addf %94, %95 : vector<8x32xf32>
    %97 = math.tanh %96 : vector<8x32xf32>
    %98 = arith.mulf %93, %97 : vector<8x32xf32>
    %99 = vector.extract_strided_slice %14 {offsets = [32, 0], sizes = [8, 128], strides = [1, 1]} : vector<64x128xf32> to vector<8x128xf32>
    %cst_27 = arith.constant dense<0.000000e+00> : vector<8x128xf32>
    %100 = tpu.matmul %98, %1, %cst_27 {dimension_numbers = #tpu.dot_dimension_numbers<[1], [0], [0], [1], [0, 0, 1, 1], [], []>} : vector<8x32xf32>, vector<32x128xf32>, vector<8x128xf32> -> vector<8x128xf32>
    %101 = arith.addf %99, %100 : vector<8x128xf32>
    %cst_28 = arith.constant 5.000000e-01 : f32
    %102 = vector.broadcast %cst_28 : f32 to vector<8x128xf32>
    %103 = arith.mulf %102, %101 : vector<8x128xf32>
    %104 = arith.select %8, %101, %103 : vector<8x128xi1>, vector<8x128xf32>
    %105 = math.tanh %104 : vector<8x128xf32>
    %cst_29 = arith.constant 5.000000e-01 : f32
    %106 = vector.broadcast %cst_29 : f32 to vector<8x128xf32>
    %107 = arith.mulf %106, %105 : vector<8x128xf32>
    %cst_30 = arith.constant 5.000000e-01 : f32
    %108 = vector.broadcast %cst_30 : f32 to vector<8x128xf32>
    %109 = arith.addf %107, %108 : vector<8x128xf32>
    %110 = arith.select %8, %105, %109 : vector<8x128xi1>, vector<8x128xf32>
    %111 = vector.extract_strided_slice %110 {offsets = [0, 0], sizes = [8, 32], strides = [1, 1]} : vector<8x128xf32> to vector<8x32xf32>
    %112 = vector.extract_strided_slice %110 {offsets = [0, 32], sizes = [8, 32], strides = [1, 1]} : vector<8x128xf32> to vector<8x32xf32>
    %113 = vector.extract_strided_slice %110 {offsets = [0, 64], sizes = [8, 32], strides = [1, 1]} : vector<8x128xf32> to vector<8x32xf32>
    %114 = vector.extract_strided_slice %110 {offsets = [0, 96], sizes = [8, 32], strides = [1, 1]} : vector<8x128xf32> to vector<8x32xf32>
    %115 = arith.mulf %112, %96 : vector<8x32xf32>
    %116 = arith.mulf %111, %113 : vector<8x32xf32>
    %117 = arith.addf %115, %116 : vector<8x32xf32>
    %118 = math.tanh %117 : vector<8x32xf32>
    %119 = arith.mulf %114, %118 : vector<8x32xf32>
    %120 = vector.extract_strided_slice %14 {offsets = [40, 0], sizes = [8, 128], strides = [1, 1]} : vector<64x128xf32> to vector<8x128xf32>
    %cst_31 = arith.constant dense<0.000000e+00> : vector<8x128xf32>
    %121 = tpu.matmul %119, %1, %cst_31 {dimension_numbers = #tpu.dot_dimension_numbers<[1], [0], [0], [1], [0, 0, 1, 1], [], []>} : vector<8x32xf32>, vector<32x128xf32>, vector<8x128xf32> -> vector<8x128xf32>
    %122 = arith.addf %120, %121 : vector<8x128xf32>
    %cst_32 = arith.constant 5.000000e-01 : f32
    %123 = vector.broadcast %cst_32 : f32 to vector<8x128xf32>
    %124 = arith.mulf %123, %122 : vector<8x128xf32>
    %125 = arith.select %8, %122, %124 : vector<8x128xi1>, vector<8x128xf32>
    %126 = math.tanh %125 : vector<8x128xf32>
    %cst_33 = arith.constant 5.000000e-01 : f32
    %127 = vector.broadcast %cst_33 : f32 to vector<8x128xf32>
    %128 = arith.mulf %127, %126 : vector<8x128xf32>
    %cst_34 = arith.constant 5.000000e-01 : f32
    %129 = vector.broadcast %cst_34 : f32 to vector<8x128xf32>
    %130 = arith.addf %128, %129 : vector<8x128xf32>
    %131 = arith.select %8, %126, %130 : vector<8x128xi1>, vector<8x128xf32>
    %132 = vector.extract_strided_slice %131 {offsets = [0, 0], sizes = [8, 32], strides = [1, 1]} : vector<8x128xf32> to vector<8x32xf32>
    %133 = vector.extract_strided_slice %131 {offsets = [0, 32], sizes = [8, 32], strides = [1, 1]} : vector<8x128xf32> to vector<8x32xf32>
    %134 = vector.extract_strided_slice %131 {offsets = [0, 64], sizes = [8, 32], strides = [1, 1]} : vector<8x128xf32> to vector<8x32xf32>
    %135 = vector.extract_strided_slice %131 {offsets = [0, 96], sizes = [8, 32], strides = [1, 1]} : vector<8x128xf32> to vector<8x32xf32>
    %136 = arith.mulf %133, %117 : vector<8x32xf32>
    %137 = arith.mulf %132, %134 : vector<8x32xf32>
    %138 = arith.addf %136, %137 : vector<8x32xf32>
    %139 = math.tanh %138 : vector<8x32xf32>
    %140 = arith.mulf %135, %139 : vector<8x32xf32>
    %141 = vector.extract_strided_slice %14 {offsets = [48, 0], sizes = [8, 128], strides = [1, 1]} : vector<64x128xf32> to vector<8x128xf32>
    %cst_35 = arith.constant dense<0.000000e+00> : vector<8x128xf32>
    %142 = tpu.matmul %140, %1, %cst_35 {dimension_numbers = #tpu.dot_dimension_numbers<[1], [0], [0], [1], [0, 0, 1, 1], [], []>} : vector<8x32xf32>, vector<32x128xf32>, vector<8x128xf32> -> vector<8x128xf32>
    %143 = arith.addf %141, %142 : vector<8x128xf32>
    %cst_36 = arith.constant 5.000000e-01 : f32
    %144 = vector.broadcast %cst_36 : f32 to vector<8x128xf32>
    %145 = arith.mulf %144, %143 : vector<8x128xf32>
    %146 = arith.select %8, %143, %145 : vector<8x128xi1>, vector<8x128xf32>
    %147 = math.tanh %146 : vector<8x128xf32>
    %cst_37 = arith.constant 5.000000e-01 : f32
    %148 = vector.broadcast %cst_37 : f32 to vector<8x128xf32>
    %149 = arith.mulf %148, %147 : vector<8x128xf32>
    %cst_38 = arith.constant 5.000000e-01 : f32
    %150 = vector.broadcast %cst_38 : f32 to vector<8x128xf32>
    %151 = arith.addf %149, %150 : vector<8x128xf32>
    %152 = arith.select %8, %147, %151 : vector<8x128xi1>, vector<8x128xf32>
    %153 = vector.extract_strided_slice %152 {offsets = [0, 0], sizes = [8, 32], strides = [1, 1]} : vector<8x128xf32> to vector<8x32xf32>
    %154 = vector.extract_strided_slice %152 {offsets = [0, 32], sizes = [8, 32], strides = [1, 1]} : vector<8x128xf32> to vector<8x32xf32>
    %155 = vector.extract_strided_slice %152 {offsets = [0, 64], sizes = [8, 32], strides = [1, 1]} : vector<8x128xf32> to vector<8x32xf32>
    %156 = vector.extract_strided_slice %152 {offsets = [0, 96], sizes = [8, 32], strides = [1, 1]} : vector<8x128xf32> to vector<8x32xf32>
    %157 = arith.mulf %154, %138 : vector<8x32xf32>
    %158 = arith.mulf %153, %155 : vector<8x32xf32>
    %159 = arith.addf %157, %158 : vector<8x32xf32>
    %160 = math.tanh %159 : vector<8x32xf32>
    %161 = arith.mulf %156, %160 : vector<8x32xf32>
    %162 = vector.extract_strided_slice %14 {offsets = [56, 0], sizes = [8, 128], strides = [1, 1]} : vector<64x128xf32> to vector<8x128xf32>
    %cst_39 = arith.constant dense<0.000000e+00> : vector<8x128xf32>
    %163 = tpu.matmul %161, %1, %cst_39 {dimension_numbers = #tpu.dot_dimension_numbers<[1], [0], [0], [1], [0, 0, 1, 1], [], []>} : vector<8x32xf32>, vector<32x128xf32>, vector<8x128xf32> -> vector<8x128xf32>
    %164 = arith.addf %162, %163 : vector<8x128xf32>
    %cst_40 = arith.constant 5.000000e-01 : f32
    %165 = vector.broadcast %cst_40 : f32 to vector<8x128xf32>
    %166 = arith.mulf %165, %164 : vector<8x128xf32>
    %167 = arith.select %8, %164, %166 : vector<8x128xi1>, vector<8x128xf32>
    %168 = math.tanh %167 : vector<8x128xf32>
    %cst_41 = arith.constant 5.000000e-01 : f32
    %169 = vector.broadcast %cst_41 : f32 to vector<8x128xf32>
    %170 = arith.mulf %169, %168 : vector<8x128xf32>
    %cst_42 = arith.constant 5.000000e-01 : f32
    %171 = vector.broadcast %cst_42 : f32 to vector<8x128xf32>
    %172 = arith.addf %170, %171 : vector<8x128xf32>
    %173 = arith.select %8, %168, %172 : vector<8x128xi1>, vector<8x128xf32>
    %174 = vector.extract_strided_slice %173 {offsets = [0, 0], sizes = [8, 32], strides = [1, 1]} : vector<8x128xf32> to vector<8x32xf32>
    %175 = vector.extract_strided_slice %173 {offsets = [0, 32], sizes = [8, 32], strides = [1, 1]} : vector<8x128xf32> to vector<8x32xf32>
    %176 = vector.extract_strided_slice %173 {offsets = [0, 64], sizes = [8, 32], strides = [1, 1]} : vector<8x128xf32> to vector<8x32xf32>
    %177 = vector.extract_strided_slice %173 {offsets = [0, 96], sizes = [8, 32], strides = [1, 1]} : vector<8x128xf32> to vector<8x32xf32>
    %178 = arith.mulf %175, %159 : vector<8x32xf32>
    %179 = arith.mulf %174, %176 : vector<8x32xf32>
    %180 = arith.addf %178, %179 : vector<8x32xf32>
    %181 = math.tanh %180 : vector<8x32xf32>
    %182 = arith.mulf %177, %181 : vector<8x32xf32>
    %c0_43 = arith.constant 0 : index
    %c0_44 = arith.constant 0 : index
    %183 = vector.load %arg4[%c0_43, %c0_44] : memref<1x32xf32, #tpu.memory_space<vmem>>, vector<1x32xf32>
    %184 = vector.broadcast %183 : vector<1x32xf32> to vector<8x32xf32>
    %185 = arith.mulf %182, %184 : vector<8x32xf32>
    %cst_45 = arith.constant dense<0.000000e+00> : vector<8xf32>
    %186 = vector.multi_reduction <add>, %185, %cst_45 [1] : vector<8x32xf32> to vector<8xf32>
    %187 = vector.shape_cast %186 : vector<8xf32> to vector<8x1xf32>
    %c0_46 = arith.constant 0 : index
    %c0_47 = arith.constant 0 : index
    %188 = vector.load %arg5[%c0_46, %c0_47] : memref<1x1xf32, #tpu.memory_space<vmem>>, vector<1x1xf32>
    %189 = vector.broadcast %188 : vector<1x1xf32> to vector<8x1xf32>
    %190 = arith.addf %187, %189 : vector<8x1xf32>
    %c0_48 = arith.constant 0 : index
    %c0_49 = arith.constant 0 : index
    %191 = vector.load %arg8[%c0_48, %c0_49] : memref<8x1xf32, #tpu.memory_space<vmem>>, vector<8x1xf32>
    tpu.vector_store %arg8[%c0_48, %c0_49], %190 {strides = array<i32>} : memref<8x1xf32, #tpu.memory_space<vmem>>, vector<8x1xf32>,
    %c0_50 = arith.constant 0 : index
    %c0_51 = arith.constant 0 : index
    %192 = vector.load %arg9[%c0_50, %c0_51] : memref<8x32xf32, #tpu.memory_space<vmem>>, vector<8x32xf32>
    tpu.vector_store %arg9[%c0_50, %c0_51], %182 {strides = array<i32>} : memref<8x32xf32, #tpu.memory_space<vmem>>, vector<8x32xf32>,
    %c0_52 = arith.constant 0 : index
    %c0_53 = arith.constant 0 : index
    %193 = vector.load %arg10[%c0_52, %c0_53] : memref<8x32xf32, #tpu.memory_space<vmem>>, vector<8x32xf32>
    tpu.vector_store %arg10[%c0_52, %c0_53], %180 {strides = array<i32>} : memref<8x32xf32, #tpu.memory_space<vmem>>, vector<8x32xf32>,
    return
  }
}

</mosaic_0001>

<llo_original>
// kernel: _forward_jit.1
$region0: #{_forward_jit.1}
  #allocation0 [shape = 'u32[]', space=smem, size = 0x4, offset = 0x4, fixed_abs, tag = 'smem constant byte address 0x4 - core index']
  #allocation1 [shape = 'u32[72,128]{1,0:T(1,128)}', space=vmem, size = 0x9000, scoped, tag = 'internal scratch']
  #allocation2 [shape = 'f32[1,1]{1,0:T(1,128)S(1)}', space=vmem, size = 0x200, scoped, tag = 'scoped memory for _forward_jit.1']
  %s0 = inlined_call_operand.vmem [shape: f32[64,16], index: 0, kind: input, shape index: {}]
  %s1 = inlined_call_operand.vmem [shape: f32[16,128], index: 1, kind: input, shape index: {}]
  %s2 = inlined_call_operand.vmem [shape: f32[32,128], index: 2, kind: input, shape index: {}]
  %s3 = inlined_call_operand.vmem [shape: f32[1,128], index: 3, kind: input, shape index: {}]
  %s4 = inlined_call_operand.vmem [shape: f32[1,32], index: 4, kind: input, shape index: {}]
  %s5 = inlined_call_operand.<no memory space> [shape: f32[1,1], index: 5, kind: input, shape index: {}]
  %s6 = inlined_call_operand.vmem [shape: f32[8,32], index: 6, kind: input, shape index: {}]
  %s7 = inlined_call_operand.vmem [shape: f32[8,32], index: 7, kind: input, shape index: {}]
  %s8 = inlined_call_operand.vmem [shape: f32[8,1], index: 8, kind: output, shape index: {0}]
  %s9 = inlined_call_operand.hbm [shape: f32[8,32], index: 9, kind: output, shape index: {1}]
  %s10 = inlined_call_operand.hbm [shape: f32[8,32], index: 10, kind: output, shape index: {2}]
  %11 = xla_tuple %s8, %s9, %s10
  %s12 = sld [smem:[#allocation0]]
  $region58: #{_forward_jit.1} parent=0
    _
  %s14 = ssub.s32 1, %s12
  %s15 = scalar_select 0, %s14, %s12
  %v16 = vstv %s5
  %17 = vst [vmem:[#allocation2] sm:$0x1] %v16
  $region1: #{_forward_jit.1} parent=0
    #allocation3 [shape = 'u8[4096]{0}', space=vmem, size = 0x1000, scoped, tag = 'output window, operand 1, single buffered']
    #allocation4 [shape = 's32[1]{0}', space=sflag, size = 0x4, scoped, tag = 'scoped memory for _forward_jit.1']
    #allocation5 [shape = 'u8[4096]{0}', space=vmem, size = 0x1000, scoped, tag = 'output window, operand 2, single buffered']
    #allocation6 [shape = 's32[1]{0}', space=sflag, size = 0x4, scoped, tag = 'scoped memory for _forward_jit.1']
    %18 = vsyncpa [#allocation4], 0
    %19 = vsyncpa [#allocation6], 0
    // Predicated region
    $region2: #{_forward_jit.1} parent=1 // pred_check
      _
    $region3: #{_forward_jit.1} parent=1 // pred_check_branch
      %21 = sbr.rel (0) target = $region5
    $region4: #{_forward_jit.1} parent=1 // pred_region
      _
    $region5: #{_forward_jit.1} parent=1 // pred_fallthru
      _
    // Predicated region
    $region6: #{_forward_jit.1} parent=1 // pred_check
      _
    $region7: #{_forward_jit.1} parent=1 // pred_check_branch
      %23 = sbr.rel (0) target = $region9
    $region8: #{_forward_jit.1} parent=1 // pred_region
      _
    $region9: #{_forward_jit.1} parent=1 // pred_fallthru
      _
    // Predicated region
    $region10: #{_forward_jit.1} parent=1 // pred_check
      _
    $region11: #{_forward_jit.1} parent=1 // pred_check_branch
      %25 = sbr.rel (0) target = $region13
    $region12: #{_forward_jit.1} parent=1 // pred_region
      _
    $region13: #{_forward_jit.1} parent=1 // pred_fallthru
      _
    // Predicated region
    $region14: #{_forward_jit.1} parent=1 // pred_check
      _
    $region15: #{_forward_jit.1} parent=1 // pred_check_branch
      %27 = sbr.rel (0) target = $region17
    $region16: #{_forward_jit.1} parent=1 // pred_region
      _
    $region17: #{_forward_jit.1} parent=1 // pred_fallthru
      _
    // Predicated region
    $region18: #{_forward_jit.1} parent=1 // pred_check
      _
    $region19: #{_forward_jit.1} parent=1 // pred_check_branch
      %29 = sbr.rel (0) target = $region21
    $region20: #{_forward_jit.1} parent=1 // pred_region
      _
    $region21: #{_forward_jit.1} parent=1 // pred_fallthru
      _
    // Predicated region
    $region22: #{_forward_jit.1} parent=1 // pred_check
      _
    $region23: #{_forward_jit.1} parent=1 // pred_check_branch
      %31 = sbr.rel (0) target = $region25
    $region24: #{_forward_jit.1} parent=1 // pred_region
      _
    $region25: #{_forward_jit.1} parent=1 // pred_fallthru
      _
    // Predicated region
    $region26: #{_forward_jit.1} parent=1 // pred_check
      _
    $region27: #{_forward_jit.1} parent=1 // pred_check_branch
      %33 = sbr.rel (0) target = $region29
    $region28: #{_forward_jit.1} parent=1 // pred_region
      _
    $region29: #{_forward_jit.1} parent=1 // pred_fallthru
      _
    // Predicated region
    $region30: #{_forward_jit.1} parent=1 // pred_check
      _
    $region31: #{_forward_jit.1} parent=1 // pred_check_branch
      %35 = sbr.rel (0) target = $region33
    $region32: #{_forward_jit.1} parent=1 // pred_region
      _
    $region33: #{_forward_jit.1} parent=1 // pred_fallthru
      _
    %v36 = vld [vmem:[%s1] sm:$0xff]
    %v37 = vld [vmem:[%s1 + $0x8] sm:$0xff]
    %v38 = vld [vmem:[%s2] sm:$0xff]
    %v39 = vld [vmem:[%s2 + $0x8] sm:$0xff]
    %v40 = vld [vmem:[%s2 + $0x10] sm:$0xff]
    %v41 = vld [vmem:[%s2 + $0x18] sm:$0xff]
    %v42 = vld [vmem:[%s3] sm:$0x1]
    %v43 = vlaneseq
    %v44 = vand.u32 %v43, 127
    %vm45 = vcmp.ge.s32.totalorder %v44, 64
    %vm46 = vcmp.lt.s32.totalorder %v44, 96
    %vm47 = vmand %vm45, %vm46
    %v48 = vld [vmem:[%s6] sm:$0xff]
    %v49 = vld [vmem:[%s7] sm:$0xff]
    %v50 = vld [vmem:[%s0] sm:$0xff]
    %v51 = vld [vmem:[%s0 + $0x8] sm:$0xff]
    %v52 = vld [vmem:[%s0 + $0x10] sm:$0xff]
    %v53 = vld [vmem:[%s0 + $0x18] sm:$0xff]
    %v54 = vld [vmem:[%s0 + $0x20] sm:$0xff]
    %v55 = vld [vmem:[%s0 + $0x28] sm:$0xff]
    %v56 = vld [vmem:[%s0 + $0x30] sm:$0xff]
    %v57 = vld [vmem:[%s0 + $0x38] sm:$0xff]
    %v59 = vperm.slane %v42, 0
    %vm61 = vcmask 130048
    %v63 = vsel %vm61, %v50, 0
    %v66 = vsel %vm61, %v51, 0
    %v69 = vsel %vm61, %v52, 0
    %v72 = vsel %vm61, %v53, 0
    %v75 = vsel %vm61, %v54, 0
    %v78 = vsel %vm61, %v55, 0
    %v81 = vsel %vm61, %v56, 0
    %v84 = vsel %vm61, %v57, 0
    %86 = vmatpush.msra.mxu0 0.0
    %87 = vmatpush.msra.mxu0 0.0
    %88 = vmatpush.msra.mxu0 0.0
    %89 = vmatpush.msra.mxu0 0.0
    %90 = vmatpush.msra.mxu0 0.0
    %91 = vmatpush.msra.mxu0 0.0
    %92 = vmatpush.msra.mxu0 0.0
    %93 = vmatpush.msra.mxu0 0.0
    %94 = vmatpush.msra.mxu0 0.0
    %95 = vmatpush.msra.mxu0 0.0
    %96 = vmatpush.msra.mxu0 0.0
    %97 = vmatpush.msra.mxu0 0.0
    %98 = vmatpush.msra.mxu0 0.0
    %99 = vmatpush.msra.mxu0 0.0
    %100 = vmatpush.msra.mxu0 %v37
    %101 = vmatpush.msra.mxu0 %v36
    %102 = vmatmul.f32.gmra.mxu0 %v63
    %v103 = vpop.f32.mrf.mxu0
    %v104 = vadd.f32 %v59, %v103
    %105 = vmatmul.f32.gmra.mxu0 %v66
    %v106 = vpop.f32.mrf.mxu0
    %v107 = vadd.f32 %v59, %v106
    %108 = vmatmul.f32.gmra.mxu0 %v69
    %v109 = vpop.f32.mrf.mxu0
    %v110 = vadd.f32 %v59, %v109
    %111 = vmatmul.f32.gmra.mxu0 %v72
    %v112 = vpop.f32.mrf.mxu0
    %v113 = vadd.f32 %v59, %v112
    %114 = vmatmul.f32.gmra.mxu0 %v75
    %v115 = vpop.f32.mrf.mxu0
    %v116 = vadd.f32 %v59, %v115
    %117 = vmatmul.f32.gmra.mxu0 %v78
    %v118 = vpop.f32.mrf.mxu0
    %v119 = vadd.f32 %v59, %v118
    %120 = vmatmul.f32.gmra.mxu0 %v81
    %v121 = vpop.f32.mrf.mxu0
    %v122 = vadd.f32 %v59, %v121
    %123 = vmatmul.f32.gmra.mxu0 %v84
    %v124 = vpop.f32.mrf.mxu0
    %v125 = vadd.f32 %v59, %v124
    %126 = vdwg.mxu0
    %vm127 = vcmask 261120
    %v129 = vsel %vm127, %v48, 0
    %131 = vmatpush.msra.mxu0 0.0
    %132 = vmatpush.msra.mxu0 0.0
    %133 = vmatpush.msra.mxu0 0.0
    %134 = vmatpush.msra.mxu0 0.0
    %135 = vmatpush.msra.mxu0 0.0
    %136 = vmatpush.msra.mxu0 0.0
    %137 = vmatpush.msra.mxu0 0.0
    %138 = vmatpush.msra.mxu0 0.0
    %139 = vmatpush.msra.mxu0 0.0
    %140 = vmatpush.msra.mxu0 0.0
    %141 = vmatpush.msra.mxu0 0.0
    %142 = vmatpush.msra.mxu0 0.0
    %143 = vmatpush.msra.mxu0 %v41
    %144 = vmatpush.msra.mxu0 %v40
    %145 = vmatpush.msra.mxu0 %v39
    %146 = vmatpush.msra.mxu0 %v38
    %147 = vmatmul.f32.gmra.mxu0 %v129
    %v148 = vpop.f32.mrf.mxu0
    %v149 = vadd.f32 0.0, %v148
    %150 = vdwg.mxu0
    %v151 = vadd.f32 %v104, %v149
    %v152 = vmul.f32 %v151, 0.5
    %v153 = vsel %vm47, %v151, %v152
    %v154 = vtanh.pop %v153
    %v155 = vmul.f32 %v154, 0.5
    %v156 = vadd.f32 %v155, 0.5
    %v157 = vsel %vm47, %v154, %v156
    %159 = vrot.lane.b32.xlu0 %v49, 32
    %v160 = vpop.permute.xlu0 %159
    %v162 = vmul.f32 %v157, %v160
    %164 = vrot.lane.b32.xlu0 %v157, 64
    %v165 = vpop.permute.xlu0 %164
    %v167 = vmul.f32 %v157, %v165
    %169 = vrot.lane.b32.xlu0 %v167, 32
    %v170 = vpop.permute.xlu0 %169
    %v172 = vadd.f32 %v162, %v170
    %v173 = vtanh.pop %v172
    %175 = vrot.lane.b32.xlu0 %v173, 64
    %v176 = vpop.permute.xlu0 %175
    %v178 = vmul.f32 %v157, %v176
    %180 = vrot.lane.b32.xlu0 %v178, 32
    %v181 = vpop.permute.xlu0 %180
    %v182 = vsel %vm127, %v181, 0
    %184 = vmatpush.msra.mxu0 0.0
    %185 = vmatpush.msra.mxu0 0.0
    %186 = vmatpush.msra.mxu0 0.0
    %187 = vmatpush.msra.mxu0 0.0
    %188 = vmatpush.msra.mxu0 0.0
    %189 = vmatpush.msra.mxu0 0.0
    %190 = vmatpush.msra.mxu0 0.0
    %191 = vmatpush.msra.mxu0 0.0
    %192 = vmatpush.msra.mxu0 0.0
    %193 = vmatpush.msra.mxu0 0.0
    %194 = vmatpush.msra.mxu0 0.0
    %195 = vmatpush.msra.mxu0 0.0
    %196 = vmatpush.msra.mxu0 %v41
    %197 = vmatpush.msra.mxu0 %v40
    %198 = vmatpush.msra.mxu0 %v39
    %199 = vmatpush.msra.mxu0 %v38
    %200 = vmatmul.f32.gmra.mxu0 %v182
    %v201 = vpop.f32.mrf.mxu0
    %v202 = vadd.f32 0.0, %v201
    %203 = vdwg.mxu0
    %v204 = vadd.f32 %v107, %v202
    %v205 = vmul.f32 %v204, 0.5
    %v206 = vsel %vm47, %v204, %v205
    %v207 = vtanh.pop %v206
    %v208 = vmul.f32 %v207, 0.5
    %v209 = vadd.f32 %v208, 0.5
    %v210 = vsel %vm47, %v207, %v209
    %v211 = vmul.f32 %v210, %v172
    %213 = vrot.lane.b32.xlu0 %v210, 64
    %v214 = vpop.permute.xlu0 %213
    %v216 = vmul.f32 %v210, %v214
    %218 = vrot.lane.b32.xlu0 %v216, 32
    %v219 = vpop.permute.xlu0 %218
    %v221 = vadd.f32 %v211, %v219
    %v222 = vtanh.pop %v221
    %224 = vrot.lane.b32.xlu0 %v222, 64
    %v225 = vpop.permute.xlu0 %224
    %v227 = vmul.f32 %v210, %v225
    %229 = vrot.lane.b32.xlu0 %v227, 32
    %v230 = vpop.permute.xlu0 %229
    %v231 = vsel %vm127, %v230, 0
    %233 = vmatpush.msra.mxu0 0.0
    %234 = vmatpush.msra.mxu0 0.0
    %235 = vmatpush.msra.mxu0 0.0
    %236 = vmatpush.msra.mxu0 0.0
    %237 = vmatpush.msra.mxu0 0.0
    %238 = vmatpush.msra.mxu0 0.0
    %239 = vmatpush.msra.mxu0 0.0
    %240 = vmatpush.msra.mxu0 0.0
    %241 = vmatpush.msra.mxu0 0.0
    %242 = vmatpush.msra.mxu0 0.0
    %243 = vmatpush.msra.mxu0 0.0
    %244 = vmatpush.msra.mxu0 0.0
    %245 = vmatpush.msra.mxu0 %v41
    %246 = vmatpush.msra.mxu0 %v40
    %247 = vmatpush.msra.mxu0 %v39
    %248 = vmatpush.msra.mxu0 %v38
    %249 = vmatmul.f32.gmra.mxu0 %v231
    %v250 = vpop.f32.mrf.mxu0
    %v251 = vadd.f32 0.0, %v250
    %252 = vdwg.mxu0
    %v253 = vadd.f32 %v110, %v251
    %v254 = vmul.f32 %v253, 0.5
    %v255 = vsel %vm47, %v253, %v254
    %v256 = vtanh.pop %v255
    %v257 = vmul.f32 %v256, 0.5
    %v258 = vadd.f32 %v257, 0.5
    %v259 = vsel %vm47, %v256, %v258
    %v260 = vmul.f32 %v259, %v221
    %262 = vrot.lane.b32.xlu0 %v259, 64
    %v263 = vpop.permute.xlu0 %262
    %v265 = vmul.f32 %v259, %v263
    %267 = vrot.lane.b32.xlu0 %v265, 32
    %v268 = vpop.permute.xlu0 %267
    %v270 = vadd.f32 %v260, %v268
    %v271 = vtanh.pop %v270
    %273 = vrot.lane.b32.xlu0 %v271, 64
    %v274 = vpop.permute.xlu0 %273
    %v276 = vmul.f32 %v259, %v274
    %278 = vrot.lane.b32.xlu0 %v276, 32
    %v279 = vpop.permute.xlu0 %278
    %v280 = vsel %vm127, %v279, 0
    %282 = vmatpush.msra.mxu0 0.0
    %283 = vmatpush.msra.mxu0 0.0
    %284 = vmatpush.msra.mxu0 0.0
    %285 = vmatpush.msra.mxu0 0.0
    %286 = vmatpush.msra.mxu0 0.0
    %287 = vmatpush.msra.mxu0 0.0
    %288 = vmatpush.msra.mxu0 0.0
    %289 = vmatpush.msra.mxu0 0.0
    %290 = vmatpush.msra.mxu0 0.0
    %291 = vmatpush.msra.mxu0 0.0
    %292 = vmatpush.msra.mxu0 0.0
    %293 = vmatpush.msra.mxu0 0.0
    %294 = vmatpush.msra.mxu0 %v41
    %295 = vmatpush.msra.mxu0 %v40
    %296 = vmatpush.msra.mxu0 %v39
    %297 = vmatpush.msra.mxu0 %v38
    %298 = vmatmul.f32.gmra.mxu0 %v280
    %v299 = vpop.f32.mrf.mxu0
    %v300 = vadd.f32 0.0, %v299
    %301 = vdwg.mxu0
    %v302 = vadd.f32 %v113, %v300
    %v303 = vmul.f32 %v302, 0.5
    %v304 = vsel %vm47, %v302, %v303
    %v305 = vtanh.pop %v304
    %v306 = vmul.f32 %v305, 0.5
    %v307 = vadd.f32 %v306, 0.5
    %v308 = vsel %vm47, %v305, %v307
    %v309 = vmul.f32 %v308, %v270
    %311 = vrot.lane.b32.xlu0 %v308, 64
    %v312 = vpop.permute.xlu0 %311
    %v314 = vmul.f32 %v308, %v312
    %316 = vrot.lane.b32.xlu0 %v314, 32
    %v317 = vpop.permute.xlu0 %316
    %v319 = vadd.f32 %v309, %v317
    %v320 = vtanh.pop %v319
    %322 = vrot.lane.b32.xlu0 %v320, 64
    %v323 = vpop.permute.xlu0 %322
    %v325 = vmul.f32 %v308, %v323
    %327 = vrot.lane.b32.xlu0 %v325, 32
    %v328 = vpop.permute.xlu0 %327
    %v329 = vsel %vm127, %v328, 0
    %331 = vmatpush.msra.mxu0 0.0
    %332 = vmatpush.msra.mxu0 0.0
    %333 = vmatpush.msra.mxu0 0.0
    %334 = vmatpush.msra.mxu0 0.0
    %335 = vmatpush.msra.mxu0 0.0
    %336 = vmatpush.msra.mxu0 0.0
    %337 = vmatpush.msra.mxu0 0.0
    %338 = vmatpush.msra.mxu0 0.0
    %339 = vmatpush.msra.mxu0 0.0
    %340 = vmatpush.msra.mxu0 0.0
    %341 = vmatpush.msra.mxu0 0.0
    %342 = vmatpush.msra.mxu0 0.0
    %343 = vmatpush.msra.mxu0 %v41
    %344 = vmatpush.msra.mxu0 %v40
    %345 = vmatpush.msra.mxu0 %v39
    %346 = vmatpush.msra.mxu0 %v38
    %347 = vmatmul.f32.gmra.mxu0 %v329
    %v348 = vpop.f32.mrf.mxu0
    %v349 = vadd.f32 0.0, %v348
    %350 = vdwg.mxu0
    %v351 = vadd.f32 %v116, %v349
    %v352 = vmul.f32 %v351, 0.5
    %v353 = vsel %vm47, %v351, %v352
    %v354 = vtanh.pop %v353
    %v355 = vmul.f32 %v354, 0.5
    %v356 = vadd.f32 %v355, 0.5
    %v357 = vsel %vm47, %v354, %v356
    %v358 = vmul.f32 %v357, %v319
    %360 = vrot.lane.b32.xlu0 %v357, 64
    %v361 = vpop.permute.xlu0 %360
    %v363 = vmul.f32 %v357, %v361
    %365 = vrot.lane.b32.xlu0 %v363, 32
    %v366 = vpop.permute.xlu0 %365
    %v368 = vadd.f32 %v358, %v366
    %v369 = vtanh.pop %v368
    %371 = vrot.lane.b32.xlu0 %v369, 64
    %v372 = vpop.permute.xlu0 %371
    %v374 = vmul.f32 %v357, %v372
    %376 = vrot.lane.b32.xlu0 %v374, 32
    %v377 = vpop.permute.xlu0 %376
    %v378 = vsel %vm127, %v377, 0
    %380 = vmatpush.msra.mxu0 0.0
    %381 = vmatpush.msra.mxu0 0.0
    %382 = vmatpush.msra.mxu0 0.0
    %383 = vmatpush.msra.mxu0 0.0
    %384 = vmatpush.msra.mxu0 0.0
    %385 = vmatpush.msra.mxu0 0.0
    %386 = vmatpush.msra.mxu0 0.0
    %387 = vmatpush.msra.mxu0 0.0
    %388 = vmatpush.msra.mxu0 0.0
    %389 = vmatpush.msra.mxu0 0.0
    %390 = vmatpush.msra.mxu0 0.0
    %391 = vmatpush.msra.mxu0 0.0
    %392 = vmatpush.msra.mxu0 %v41
    %393 = vmatpush.msra.mxu0 %v40
    %394 = vmatpush.msra.mxu0 %v39
    %395 = vmatpush.msra.mxu0 %v38
    %396 = vmatmul.f32.gmra.mxu0 %v378
    %v397 = vpop.f32.mrf.mxu0
    %v398 = vadd.f32 0.0, %v397
    %399 = vdwg.mxu0
    %v400 = vadd.f32 %v119, %v398
    %v401 = vmul.f32 %v400, 0.5
    %v402 = vsel %vm47, %v400, %v401
    %v403 = vtanh.pop %v402
    %v404 = vmul.f32 %v403, 0.5
    %v405 = vadd.f32 %v404, 0.5
    %v406 = vsel %vm47, %v403, %v405
    %v407 = vmul.f32 %v406, %v368
    %409 = vrot.lane.b32.xlu0 %v406, 64
    %v410 = vpop.permute.xlu0 %409
    %v412 = vmul.f32 %v406, %v410
    %414 = vrot.lane.b32.xlu0 %v412, 32
    %v415 = vpop.permute.xlu0 %414
    %v417 = vadd.f32 %v407, %v415
    %v418 = vtanh.pop %v417
    %420 = vrot.lane.b32.xlu0 %v418, 64
    %v421 = vpop.permute.xlu0 %420
    %v423 = vmul.f32 %v406, %v421
    %425 = vrot.lane.b32.xlu0 %v423, 32
    %v426 = vpop.permute.xlu0 %425
    %v427 = vsel %vm127, %v426, 0
    %429 = vmatpush.msra.mxu0 0.0
    %430 = vmatpush.msra.mxu0 0.0
    %431 = vmatpush.msra.mxu0 0.0
    %432 = vmatpush.msra.mxu0 0.0
    %433 = vmatpush.msra.mxu0 0.0
    %434 = vmatpush.msra.mxu0 0.0
    %435 = vmatpush.msra.mxu0 0.0
    %436 = vmatpush.msra.mxu0 0.0
    %437 = vmatpush.msra.mxu0 0.0
    %438 = vmatpush.msra.mxu0 0.0
    %439 = vmatpush.msra.mxu0 0.0
    %440 = vmatpush.msra.mxu0 0.0
    %441 = vmatpush.msra.mxu0 %v41
    %442 = vmatpush.msra.mxu0 %v40
    %443 = vmatpush.msra.mxu0 %v39
    %444 = vmatpush.msra.mxu0 %v38
    %445 = vmatmul.f32.gmra.mxu0 %v427
    %v446 = vpop.f32.mrf.mxu0
    %v447 = vadd.f32 0.0, %v446
    %448 = vdwg.mxu0
    %v449 = vadd.f32 %v122, %v447
    %v450 = vmul.f32 %v449, 0.5
    %v451 = vsel %vm47, %v449, %v450
    %v452 = vtanh.pop %v451
    %v453 = vmul.f32 %v452, 0.5
    %v454 = vadd.f32 %v453, 0.5
    %v455 = vsel %vm47, %v452, %v454
    %v456 = vmul.f32 %v455, %v417
    %458 = vrot.lane.b32.xlu0 %v455, 64
    %v459 = vpop.permute.xlu0 %458
    %v461 = vmul.f32 %v455, %v459
    %463 = vrot.lane.b32.xlu0 %v461, 32
    %v464 = vpop.permute.xlu0 %463
    %v466 = vadd.f32 %v456, %v464
    %v467 = vtanh.pop %v466
    %469 = vrot.lane.b32.xlu0 %v467, 64
    %v470 = vpop.permute.xlu0 %469
    %v472 = vmul.f32 %v455, %v470
    %474 = vrot.lane.b32.xlu0 %v472, 32
    %v475 = vpop.permute.xlu0 %474
    %v476 = vsel %vm127, %v475, 0
    %478 = vmatpush.msra.mxu0 0.0
    %479 = vmatpush.msra.mxu0 0.0
    %480 = vmatpush.msra.mxu0 0.0
    %481 = vmatpush.msra.mxu0 0.0
    %482 = vmatpush.msra.mxu0 0.0
    %483 = vmatpush.msra.mxu0 0.0
    %484 = vmatpush.msra.mxu0 0.0
    %485 = vmatpush.msra.mxu0 0.0
    %486 = vmatpush.msra.mxu0 0.0
    %487 = vmatpush.msra.mxu0 0.0
    %488 = vmatpush.msra.mxu0 0.0
    %489 = vmatpush.msra.mxu0 0.0
    %490 = vmatpush.msra.mxu0 %v41
    %491 = vmatpush.msra.mxu0 %v40
    %492 = vmatpush.msra.mxu0 %v39
    %493 = vmatpush.msra.mxu0 %v38
    %494 = vmatmul.f32.gmra.mxu0 %v476
    %v495 = vpop.f32.mrf.mxu0
    %v496 = vadd.f32 0.0, %v495
    %497 = vdwg.mxu0
    %v498 = vadd.f32 %v125, %v496
    %v499 = vmul.f32 %v498, 0.5
    %v500 = vsel %vm47, %v498, %v499
    %v501 = vtanh.pop %v500
    %v502 = vmul.f32 %v501, 0.5
    %v503 = vadd.f32 %v502, 0.5
    %v504 = vsel %vm47, %v501, %v503
    %v505 = vmul.f32 %v504, %v466
    %507 = vrot.lane.b32.xlu0 %v504, 64
    %v508 = vpop.permute.xlu0 %507
    %v510 = vmul.f32 %v504, %v508
    %512 = vrot.lane.b32.xlu0 %v510, 32
    %v513 = vpop.permute.xlu0 %512
    %v515 = vadd.f32 %v505, %v513
    %v516 = vtanh.pop %v515
    %518 = vrot.lane.b32.xlu0 %v516, 64
    %v519 = vpop.permute.xlu0 %518
    %v521 = vmul.f32 %v504, %v519
    %v522 = vld [vmem:[%s4] sm:$0x1]
    %v524 = vperm.slane %v522, 0
    %525 = vrot.lane.b32.xlu0 %v524, 96
    %v526 = vpop.permute.xlu0 %525
    %v528 = vmul.f32 %v521, %v526
    %530 = vrot.lane.b32.xlu0 %v528, 32
    %v531 = vpop.permute.xlu0 %530
    %v533 = vsel %vm127, %v531, 0.0
    %534 = vadd.xlane.f32.xlu0 %v533
    %v535 = vpop.xlane.xlu0 %534
    %v536 = vld [vmem:[#allocation2] sm:$0x1]
    %v538 = vperm.slane %v536, 0
    %v540 = vadd.f32 %v535, %v538
    %vm541 = vcmask 7168
    %542 = vst.msk [vmem:[%s8] sm:$0xff] %vm541, %v540
    %544 = vrot.lane.b32.xlu0 %v521, 32
    %v545 = vpop.permute.xlu0 %544
    %547 = vst.msk [vmem:[#allocation3] sm:$0xff] %vm127, %v545
    %549 = vrot.lane.b32.xlu0 %v515, 96
    %v550 = vpop.permute.xlu0 %549
    %552 = vst.msk [vmem:[#allocation5] sm:$0xff] %vm127, %v550
    // Predicated region
    $region34: #{_forward_jit.1} parent=1 // pred_check
      _
    $region35: #{_forward_jit.1} parent=1 // pred_check_branch
      %554 = sbr.rel (0) target = $region37
    $region36: #{_forward_jit.1} parent=1 // pred_region
      _
    $region37: #{_forward_jit.1} parent=1 // pred_fallthru
      _
    // Predicated region
    $region38: #{_forward_jit.1} parent=1 // pred_check
      _
    $region39: #{_forward_jit.1} parent=1 // pred_check_branch
      %556 = sbr.rel (0) target = $region41
    $region40: #{_forward_jit.1} parent=1 // pred_region
      %558 = vsyncadd [#allocation4], 0
      %s560 = sshll.u32 [#allocation3], 4
      %s561 = int_to_ptr.vmem [resolvable:$true] %s560
      %s562 = sshll.u32 %s9, 4
      %s563 = int_to_ptr.hbm [resolvable:$true] %s562
      %565 = dma.vmem_to_hbm [thread:$0]  %s561, 128, %s563, [#allocation4]
    $region41: #{_forward_jit.1} parent=1 // pred_fallthru
      _
    // Predicated region
    $region42: #{_forward_jit.1} parent=1 // pred_check
      _
    $region43: #{_forward_jit.1} parent=1 // pred_check_branch
      %567 = sbr.rel (0) target = $region45
    $region44: #{_forward_jit.1} parent=1 // pred_region
      %569 = vsyncadd [#allocation6], 0
      %s571 = sshll.u32 [#allocation5], 4
      %s572 = int_to_ptr.vmem [resolvable:$true] %s571
      %s573 = sshll.u32 %s10, 4
      %s574 = int_to_ptr.hbm [resolvable:$true] %s573
      %576 = dma.vmem_to_hbm [thread:$0]  %s572, 128, %s574, [#allocation6]
    $region45: #{_forward_jit.1} parent=1 // pred_fallthru
      _
    // Predicated region
    $region46: #{_forward_jit.1} parent=1 // pred_check
      _
    $region47: #{_forward_jit.1} parent=1 // pred_check_branch
      %578 = sbr.rel (0) target = $region49
    $region48: #{_forward_jit.1} parent=1 // pred_region
      _
    $region49: #{_forward_jit.1} parent=1 // pred_fallthru
      _
    // Predicated region
    $region50: #{_forward_jit.1} parent=1 // pred_check
      _
    $region51: #{_forward_jit.1} parent=1 // pred_check_branch
      %580 = sbr.rel (0) target = $region53
    $region52: #{_forward_jit.1} parent=1 // pred_region
      %582 = dma.done [#allocation4], 128
    $region53: #{_forward_jit.1} parent=1 // pred_fallthru
      _
    // Predicated region
    $region54: #{_forward_jit.1} parent=1 // pred_check
      _
    $region55: #{_forward_jit.1} parent=1 // pred_check_branch
      %584 = sbr.rel (0) target = $region57
    $region56: #{_forward_jit.1} parent=1 // pred_region
      %586 = dma.done [#allocation6], 128
    $region57: #{_forward_jit.1} parent=1 // pred_fallthru
      _
    %587 = vsyncpa [#allocation4], 1
    %588 = vsyncpa [#allocation6], 1

</llo_original>
